<compile_context>
chip_gen: v5e
topology: v5e:2x2
jax: 0.10.0
libtpu: 0.0.40
codegen_flags: <defaults>
</compile_context>

<pallas_src>
import jax
import jax.numpy as jnp
from jax.experimental import pallas as pl
from jax.experimental.pallas import tpu as pltpu

LANES = 128   # lane width: hidden(10) and n_actions(3) are padded to this
HIDDEN = 10


def _round_up(x, m):
    return (x + m - 1) // m * m


def _choose_tile_b(batch, max_tile):
    """Biggest useful batch tile.  Small batches get a single grid step; large
    batches keep >=4 grid steps (DMA/compute overlap + v7x megacore) capped at
    max_tile rows (~4 MiB f32 output block each)."""
    b8 = _round_up(batch, 8)
    if b8 <= max_tile:
        return b8
    tile = min(max_tile, _round_up(pl.cdiv(b8, 4), 8))
    return max(tile, 512)


def _make_kernel(n_features, w1_off, b1_off, w2_off, b2_off):
    def kernel(x_ref, p_ref, o_ref):
        x = x_ref[...]                                    # (TILE_B, NF) f32
        w1 = p_ref[w1_off:w1_off + n_features, :]         # (NF, 128)
        b1 = p_ref[b1_off:b1_off + 1, :]                  # (1, 128)
        w2 = p_ref[w2_off:w2_off + LANES, :]              # (128, 128), rows >= hidden are 0
        b2 = p_ref[b2_off:b2_off + 1, :]                  # (1, 128)

        # Layer 1: Linear(NF -> hidden) as VPU broadcast-FMAs (K=2 is too small
        # to be worth an MXU systolic pass).
        h = jnp.broadcast_to(b1, (x.shape[0], LANES))
        for j in range(n_features):                       # static unrolled, NF tiny
            h = h + x[:, j:j + 1] * w1[j:j + 1, :]
        h = jnp.maximum(h, 0.0)                           # ReLU; padded lanes stay 0

        # Layer 2: single MXU pass.  bf16 inputs + f32 accumulation (avoids the
        # ~3x f32 MXU emulation cost); bias added back in f32.
        out = jnp.dot(h.astype(jnp.bfloat16), w2.astype(jnp.bfloat16),
                      preferred_element_type=jnp.float32) + b2
        o_ref[...] = out.astype(o_ref.dtype)

    return kernel


def pack_params(w1, b1, w2, b2):
    """w1: (NF, hidden); b1: (hidden,); w2: (hidden, n_actions); b2: (n_actions,).
    Returns one lane-dense f32 slab plus the static row offsets of each section."""
    nf, hid = w1.shape
    _, n_act = w2.shape
    w1_off = 0
    b1_off = _round_up(nf, 8)
    w2_off = b1_off + 8
    b2_off = w2_off + LANES
    rows = _round_up(b2_off + 1, 8)
    slab = jnp.zeros((rows, LANES), jnp.float32)
    slab = slab.at[w1_off:w1_off + nf, 0:hid].set(w1.astype(jnp.float32))
    slab = slab.at[b1_off, 0:hid].set(b1.astype(jnp.float32))
    slab = slab.at[w2_off:w2_off + hid, 0:n_act].set(w2.astype(jnp.float32))
    slab = slab.at[b2_off, 0:n_act].set(b2.astype(jnp.float32))
    return slab, (w1_off, b1_off, w2_off, b2_off)


def dnn_forward(x, slab, offs, n_features, n_actions, *,
                max_tile_b=8192, out_dtype=jnp.float32):
    """Forward pass of DNN: ReLU(x @ W1 + b1) @ W2 + b2.

    out_dtype=jnp.bfloat16 halves the dominant HBM write if the consumer
    tolerates it (default f32 matches the PyTorch module)."""
    B = x.shape[0]
    tile_b = _choose_tile_b(B, max_tile_b)
    b_pad = _round_up(B, tile_b)
    x = x.astype(jnp.float32)
    if b_pad != B:
        x = jnp.pad(x, ((0, b_pad - B), (0, 0)))

    kernel = _make_kernel(n_features, *offs)
    out = pl.pallas_call(
        kernel,
        out_shape=jax.ShapeDtypeStruct((b_pad, LANES), out_dtype),
        grid=(b_pad // tile_b,),
        in_specs=[
            # batch-tiled activations (pipelined / TC-sharded when B is large)
            pl.BlockSpec((tile_b, n_features), lambda i: (i, 0)),
            # single packed weight slab; constant block index -> fetched once,
            # stays resident across all grid steps.
            pl.BlockSpec(slab.shape, lambda i: (0, 0)),
        ],
        # lane-dense (128-wide) output; caller slices the real n_actions columns
        out_specs=pl.BlockSpec((tile_b, LANES), lambda i: (i, 0)),
        compiler_params=pltpu.CompilerParams(
            dimension_semantics=("parallel",),
            # Big tiles: 2x double-buffered f32 output blocks + h temp fit
            # comfortably; 48 MiB is safe on v5e/v6e (128 MiB) and v7x (64 MiB).
            vmem_limit_bytes=48 * 1024 * 1024,
        ),
    )(x, slab)
    # NOTE: a consumer inside the same jit can take the padded (b_pad, 128)
    # block directly and skip this slice (it is an extra XLA copy pass).
    return out[:B, :n_actions]


def init_params(key, n_features, n_actions, hidden=HIDDEN):
    """Matches the PyTorch init: weight ~ N(0, 0.03), bias = 0.1.
    PyTorch Linear weight is (out, in); we store it transposed (in, out)."""
    k1, k2 = jax.random.split(key)
    w1 = (0.03 * jax.random.normal(k1, (hidden, n_features))).T.astype(jnp.float32)
    b1 = jnp.full((hidden,), 0.1, dtype=jnp.float32)
    w2 = (0.03 * jax.random.normal(k2, (n_actions, hidden))).T.astype(jnp.float32)
    b2 = jnp.full((n_actions,), 0.1, dtype=jnp.float32)
    return w1, b1, w2, b2


if __name__ == "__main__":
    key = jax.random.PRNGKey(0)
    n_features, n_actions, batch = 2, 3, 8   # MountainCar: 2 state features, 3 actions

    kx, kp = jax.random.split(key)
    x = jax.random.normal(kx, (batch, n_features), dtype=jnp.float32)
    w1, b1, w2, b2 = init_params(kp, n_features, n_actions)

    slab, offs = pack_params(w1, b1, w2, b2)
    out = dnn_forward(x, slab, offs, n_features, n_actions)
    out = jax.block_until_ready(out)

    # Reference check in plain JAX (same math as the PyTorch forward).
    # Tolerance is loosened slightly because layer 2 feeds the MXU in bf16
    # (with f32 accumulation); error is ~1e-4 for this hidden=10 net.
    ref = jnp.maximum(x @ w1 + b1[None, :], 0.0) @ w2 + b2[None, :]
    assert out.shape == (batch, n_actions)
    assert jnp.allclose(out, ref, atol=2e-3, rtol=2e-3)

    print("KERNEL_OK")
</pallas_src>

<mosaic_0001>
module attributes {stable_mosaic.version = 11 : i64} {
  func.func @kernel(%arg0: i32, %arg1: memref<8x2xf32, #tpu.memory_space<vmem>>, %arg2: memref<152x128xf32, #tpu.memory_space<vmem>>, %arg3: memref<8x128xf32, #tpu.memory_space<vmem>>) attributes {dimension_semantics = [#tpu.dimension_semantics<parallel>], iteration_bounds = array<i64: 1>, scalar_prefetch = 0 : i64, scratch_operands = 0 : i64, tpu.core_type = #tpu.core_type<tc>, window_params = [{transform_indices = @transform_0, window_bounds = array<i64: 8, 2>}, {pipeline_mode = #tpu.pipeline_mode<synchronous>, transform_indices = @transform_1, window_bounds = array<i64: 152, 128>}, {transform_indices = @transform_2, window_bounds = array<i64: 8, 128>}]} {
    %c0 = arith.constant 0 : index
    %c0_0 = arith.constant 0 : index
    %0 = vector.load %arg1[%c0, %c0_0] : memref<8x2xf32, #tpu.memory_space<vmem>>, vector<8x2xf32>
    %c0_1 = arith.constant 0 : index
    %c0_2 = arith.constant 0 : index
    %1 = vector.load %arg2[%c0_1, %c0_2] : memref<152x128xf32, #tpu.memory_space<vmem>>, vector<2x128xf32>
    %c8 = arith.constant 8 : index
    %c0_3 = arith.constant 0 : index
    %2 = vector.load %arg2[%c8, %c0_3] : memref<152x128xf32, #tpu.memory_space<vmem>>, vector<1x128xf32>
    %c16 = arith.constant 16 : index
    %c0_4 = arith.constant 0 : index
    %3 = vector.load %arg2[%c16, %c0_4] : memref<152x128xf32, #tpu.memory_space<vmem>>, vector<128x128xf32>
    %c144 = arith.constant 144 : index
    %c0_5 = arith.constant 0 : index
    %4 = vector.load %arg2[%c144, %c0_5] : memref<152x128xf32, #tpu.memory_space<vmem>>, vector<1x128xf32>
    %5 = vector.shape_cast %2 : vector<1x128xf32> to vector<1x128xf32>
    %6 = vector.broadcast %5 : vector<1x128xf32> to vector<8x128xf32>
    %7 = vector.extract_strided_slice %0 {offsets = [0, 0], sizes = [8, 1], strides = [1, 1]} : vector<8x2xf32> to vector<8x1xf32>
    %8 = vector.extract_strided_slice %1 {offsets = [0, 0], sizes = [1, 128], strides = [1, 1]} : vector<2x128xf32> to vector<1x128xf32>
    %9 = vector.broadcast %7 : vector<8x1xf32> to vector<8x128xf32>
    %10 = vector.broadcast %8 : vector<1x128xf32> to vector<8x128xf32>
    %11 = arith.mulf %9, %10 : vector<8x128xf32>
    %12 = arith.addf %6, %11 : vector<8x128xf32>
    %13 = vector.extract_strided_slice %0 {offsets = [0, 1], sizes = [8, 1], strides = [1, 1]} : vector<8x2xf32> to vector<8x1xf32>
    %14 = vector.extract_strided_slice %1 {offsets = [1, 0], sizes = [1, 128], strides = [1, 1]} : vector<2x128xf32> to vector<1x128xf32>
    %15 = vector.broadcast %13 : vector<8x1xf32> to vector<8x128xf32>
    %16 = vector.broadcast %14 : vector<1x128xf32> to vector<8x128xf32>
    %17 = arith.mulf %15, %16 : vector<8x128xf32>
    %18 = arith.addf %12, %17 : vector<8x128xf32>
    %cst = arith.constant 0.000000e+00 : f32
    %19 = vector.broadcast %cst : f32 to vector<8x128xf32>
    %20 = arith.maximumf %18, %19 : vector<8x128xf32>
    %21 = arith.truncf %20 : vector<8x128xf32> to vector<8x128xbf16>
    %22 = arith.truncf %3 : vector<128x128xf32> to vector<128x128xbf16>
    %cst_6 = arith.constant dense<0.000000e+00> : vector<8x128xf32>
    %23 = tpu.matmul %21, %22, %cst_6 {dimension_numbers = #tpu.dot_dimension_numbers<[1], [0], [0], [1], [0, 0, 1, 1], [], []>} : vector<8x128xbf16>, vector<128x128xbf16>, vector<8x128xf32> -> vector<8x128xf32>
    %24 = vector.broadcast %4 : vector<1x128xf32> to vector<8x128xf32>
    %25 = arith.addf %23, %24 : vector<8x128xf32>
    %c0_7 = arith.constant 0 : index
    %c0_8 = arith.constant 0 : index
    %26 = vector.load %arg3[%c0_7, %c0_8] : memref<8x128xf32, #tpu.memory_space<vmem>>, vector<8x128xf32>
    tpu.vector_store %arg3[%c0_7, %c0_8], %25 {strides = array<i32>} : memref<8x128xf32, #tpu.memory_space<vmem>>, vector<8x128xf32>,
    return
  }
  func.func @transform_0(%arg0: i32) -> (i32, i32) {
    %c0_i32 = arith.constant 0 : i32
    %c0_i32_0 = arith.constant 0 : i32
    return %arg0, %c0_i32 : i32, i32
  }
  func.func @transform_1(%arg0: i32) -> (i32, i32) {
    %c0_i32 = arith.constant 0 : i32
    %c0_i32_0 = arith.constant 0 : i32
    %c0_i32_1 = arith.constant 0 : i32
    return %c0_i32, %c0_i32_0 : i32, i32
  }
  func.func @transform_2(%arg0: i32) -> (i32, i32) {
    %c0_i32 = arith.constant 0 : i32
    %c0_i32_0 = arith.constant 0 : i32
    return %arg0, %c0_i32 : i32, i32
  }
}

</mosaic_0001>

<llo_original>
// kernel: tpu_custom_call.1
$region0: #{tpu_custom_call.1}
  #allocation0 [shape = 'u32[]', space=smem, size = 0x4, offset = 0x4, fixed_abs, tag = 'smem constant byte address 0x4 - core index']
  #allocation1 [shape = 'u32[72,128]{1,0:T(1,128)}', space=vmem, size = 0x9000, scoped, tag = 'internal scratch']
  %s0 = inlined_call_operand.vmem [shape: f32[8,2], index: 0, kind: input, shape index: {}]
  %s1 = inlined_call_operand.hbm [shape: f32[152,128], index: 1, kind: input, shape index: {}]
  %s2 = inlined_call_operand.hbm [shape: f32[8,128], index: 2, kind: output, shape index: {}]
  %s3 = sld [smem:[#allocation0]]
  $region22: #{tpu_custom_call.1} parent=0
    _
  %s5 = ssub.s32 1, %s3
  %s6 = scalar_select 0, %s5, %s3
  $region1: #{tpu_custom_call.1} parent=0
    #allocation2 [shape = 'u8[77824]{0}', space=vmem, size = 0x13000, scoped, tag = 'input window, operand 1, single buffered']
    #allocation3 [shape = 's32[1]{0}', space=sflag, size = 0x4, scoped, tag = 'scoped memory for tpu_custom_call.1']
    #allocation4 [shape = 's32[1]{0}', space=sflag, size = 0x4, scoped, tag = 'scoped memory for tpu_custom_call.1']
    #allocation5 [shape = 'u8[4096]{0}', space=vmem, size = 0x1000, scoped, tag = 'output window, operand 0, single buffered']
    %7 = vsyncpa [#allocation3], 0
    %8 = vsyncpa [#allocation4], 0
    // Predicated region
    $region2: #{tpu_custom_call.1} parent=1 // pred_check
      _
    $region3: #{tpu_custom_call.1} parent=1 // pred_check_branch
      %10 = sbr.rel (0) target = $region5
    $region4: #{tpu_custom_call.1} parent=1 // pred_region
      _
    $region5: #{tpu_custom_call.1} parent=1 // pred_fallthru
      _
    // Predicated region
    $region6: #{tpu_custom_call.1} parent=1 // pred_check
      _
    $region7: #{tpu_custom_call.1} parent=1 // pred_check_branch
      %12 = sbr.rel (0) target = $region9
    $region8: #{tpu_custom_call.1} parent=1 // pred_region
      %14 = vsyncadd [#allocation3], 0
      %s15 = sshll.u32 %s1, 4
      %s16 = int_to_ptr.hbm [resolvable:$true] %s15
      %s17 = sshll.u32 [#allocation2], 4
      %s18 = int_to_ptr.vmem [resolvable:$true] %s17
      %23 = dma.hbm_to_vmem [thread:$0]  %s16, 2432, %s18, [#allocation3], 128, 128, 8
    $region9: #{tpu_custom_call.1} parent=1 // pred_fallthru
      _
    // Predicated region
    $region10: #{tpu_custom_call.1} parent=1 // pred_check
      _
    $region11: #{tpu_custom_call.1} parent=1 // pred_check_branch
      %25 = sbr.rel (0) target = $region13
    $region12: #{tpu_custom_call.1} parent=1 // pred_region
      %27 = dma.done [#allocation3], 2432
    $region13: #{tpu_custom_call.1} parent=1 // pred_fallthru
      _
    %v28 = vld [vmem:[%s0] sm:$0xff]
    %v29 = vld [vmem:[#allocation2] sm:$0x3]
    %v30 = vld [vmem:[#allocation2 + $0x8] sm:$0x1]
    %v31 = vld [vmem:[#allocation2 + $0x10] sm:$0xff]
    %v32 = vld [vmem:[#allocation2 + $0x18] sm:$0xff]
    %v33 = vld [vmem:[#allocation2 + $0x20] sm:$0xff]
    %v34 = vld [vmem:[#allocation2 + $0x28] sm:$0xff]
    %v35 = vld [vmem:[#allocation2 + $0x30] sm:$0xff]
    %v36 = vld [vmem:[#allocation2 + $0x38] sm:$0xff]
    %v37 = vld [vmem:[#allocation2 + $0x40] sm:$0xff]
    %v38 = vld [vmem:[#allocation2 + $0x48] sm:$0xff]
    %v39 = vld [vmem:[#allocation2 + $0x50] sm:$0xff]
    %v40 = vld [vmem:[#allocation2 + $0x58] sm:$0xff]
    %v41 = vld [vmem:[#allocation2 + $0x60] sm:$0xff]
    %v42 = vld [vmem:[#allocation2 + $0x68] sm:$0xff]
    %v43 = vld [vmem:[#allocation2 + $0x70] sm:$0xff]
    %v44 = vld [vmem:[#allocation2 + $0x78] sm:$0xff]
    %v45 = vld [vmem:[#allocation2 + $0x80] sm:$0xff]
    %v46 = vld [vmem:[#allocation2 + $0x88] sm:$0xff]
    %v47 = vld [vmem:[#allocation2 + $0x90] sm:$0x1]
    %v48 = vperm.slane %v30, 0
    %50 = vset.pattern.permute.xlu0 0
    %51 = vperm.xlu0 %50, %v28
    %v52 = vpop.permute.xlu0 %51
    %v54 = vperm.slane %v29, 0
    %v55 = vmul.f32 %v52, %v54
    %v56 = vadd.f32 %v48, %v55
    %57 = vset.pattern.permute.xlu0 1
    %58 = vperm.xlu0 %57, %v28
    %v59 = vpop.permute.xlu0 %58
    %v61 = vperm.slane %v29, 1
    %v62 = vmul.f32 %v59, %v61
    %v63 = vadd.f32 %v56, %v62
    %v64 = vmax.f32 %v63, 0.0
    %v65 = vpack.c.bf16 %v64, %v64
    %v66 = vpack.c.bf16 %v32, %v31
    %v67 = vpack.c.bf16 %v34, %v33
    %v68 = vpack.c.bf16 %v36, %v35
    %v69 = vpack.c.bf16 %v38, %v37
    %v70 = vpack.c.bf16 %v40, %v39
    %v71 = vpack.c.bf16 %v42, %v41
    %v72 = vpack.c.bf16 %v44, %v43
    %v73 = vpack.c.bf16 %v46, %v45
    %v74 = vperm.slane %v47, 0
    %75 = vmatpush.bf16.msra.mxu0 %v73
    %76 = vmatpush.bf16.msra.mxu0 %v72
    %77 = vmatpush.bf16.msra.mxu0 %v71
    %78 = vmatpush.bf16.msra.mxu0 %v70
    %79 = vmatpush.bf16.msra.mxu0 %v69
    %80 = vmatpush.bf16.msra.mxu0 %v68
    %81 = vmatpush.bf16.msra.mxu0 %v67
    %82 = vmatpush.bf16.msra.mxu0 %v66
    %83 = vmatmul.bf16.gmra.mxu0 %v65
    %v84 = vpop.f32.mrf.mxu0
    %v85 = vadd.f32 %v74, %v84
    %v86 = vpop.f32.mrf.mxu0
    %87 = vdwg.mxu0
    %88 = vst [vmem:[#allocation5] sm:$0xff] %v85
    // Predicated region
    $region14: #{tpu_custom_call.1} parent=1 // pred_check
      _
    $region15: #{tpu_custom_call.1} parent=1 // pred_check_branch
      %90 = sbr.rel (0) target = $region17
    $region16: #{tpu_custom_call.1} parent=1 // pred_region
      %92 = vsyncadd [#allocation4], 0
      %s94 = sshll.u32 [#allocation5], 4
      %s95 = int_to_ptr.vmem [resolvable:$true] %s94
      %s96 = sshll.u32 %s2, 4
      %s97 = int_to_ptr.hbm [resolvable:$true] %s96
      %99 = dma.vmem_to_hbm [thread:$0]  %s95, 128, %s97, [#allocation4]
    $region17: #{tpu_custom_call.1} parent=1 // pred_fallthru
      _
    // Predicated region
    $region18: #{tpu_custom_call.1} parent=1 // pred_check
      _
    $region19: #{tpu_custom_call.1} parent=1 // pred_check_branch
      %101 = sbr.rel (0) target = $region21
    $region20: #{tpu_custom_call.1} parent=1 // pred_region
      %103 = dma.done [#allocation4], 128
    $region21: #{tpu_custom_call.1} parent=1 // pred_fallthru
      _
    %104 = vsyncpa [#allocation3], 1
    %105 = vsyncpa [#allocation4], 1

</llo_original>
